<compile_context>
chip_gen: v6e
topology: v6e:2x2x1
jax: 0.10.0
libtpu: 0.0.40
codegen_flags: <defaults>
</compile_context>

<pallas_src>
import functools
import math

import jax
import jax.numpy as jnp
from jax.experimental import pallas as pl
from jax.experimental.pallas import tpu as pltpu

H1, H2, H3 = 64, 32, 32  # hidden widths fixed by the PyTorch module


def _mlp_kernel(pack, x_ref,
                w1_ref, b1_ref, w2_ref, b2_ref, w3_ref, b3_ref, w4_ref, b4_ref,
                o_ref):
    """Fused 4x(Linear+ReLU) on one (TB, D) batch tile."""
    # In-kernel dtype cast: x streams from HBM in its native dtype; the VPU
    # cast is free filler underneath the DMA.
    x = x_ref[...].astype(w1_ref.dtype)

    # MXU matmuls accumulate in f32; bias add / ReLU stay in f32 vregs.
    h = jnp.dot(x, w1_ref[...], preferred_element_type=jnp.float32) + b1_ref[...]
    h = jnp.maximum(h, 0.0)
    h = jnp.dot(h.astype(w2_ref.dtype), w2_ref[...],
                preferred_element_type=jnp.float32) + b2_ref[...]
    h = jnp.maximum(h, 0.0)
    h = jnp.dot(h.astype(w3_ref.dtype), w3_ref[...],
                preferred_element_type=jnp.float32) + b3_ref[...]
    h = jnp.maximum(h, 0.0)
    h = jnp.dot(h.astype(w4_ref.dtype), w4_ref[...],
                preferred_element_type=jnp.float32) + b4_ref[...]
    h = jnp.maximum(h, 0.0)

    if pack > 1:
        # Lane-dense store: row-major repack (TB, F) -> (TB//pack, pack*F) so
        # the output block is 128 lanes wide.  XLU relayout work; the XLU slot
        # is idle in this kernel.  Undone by a free reshape in the wrapper.
        tb, f = h.shape
        h = h.reshape(tb // pack, pack * f)

    o_ref[...] = h.astype(o_ref.dtype)


def _batch_axis_semantics(num_tiles):
    """CORE_PARALLEL on v7x (2 TensorCores) so the batch-tile axis is actually
    sharded across cores; plain "parallel" elsewhere (1-TC v5e/v6e)."""
    core_parallel = getattr(pltpu, "CORE_PARALLEL", None)
    try:
        kind = jax.devices()[0].device_kind.lower()
    except Exception:
        kind = ""
    if core_parallel is not None and num_tiles >= 2 and "7" in kind:
        return (core_parallel,)
    return ("parallel",)


def mlp_extractor_forward(observations, params, *,
                          tile_rows=8192,
                          compute_dtype=jnp.float32,
                          x_buffers=2):
    """observations: (B, *obs_shape), any dtype.  Returns (B, features_dim) f32."""
    B = observations.shape[0]
    # nn.Flatten(): metadata-only reshape, kept in the native dtype (no f32 copy).
    x = observations.reshape(B, -1)
    D = x.shape[1]

    # Weights in the compute dtype (bf16 halves their stream / enables fast MXU
    # path); biases stay f32 so the bias-add/ReLU epilogue is exact.
    w1 = params["w1"].astype(compute_dtype); b1 = params["b1"].astype(jnp.float32)
    w2 = params["w2"].astype(compute_dtype); b2 = params["b2"].astype(jnp.float32)
    w3 = params["w3"].astype(compute_dtype); b3 = params["b3"].astype(jnp.float32)
    w4 = params["w4"].astype(compute_dtype); b4 = params["b4"].astype(jnp.float32)
    F = w4.shape[1]
    flat_w = (w1, b1, w2, b2, w3, b3, w4, b4)

    x_item = x.dtype.itemsize
    w_item = jnp.dtype(compute_dtype).itemsize

    # ---------- VMEM budget & tile size (per-generation safe) ----------
    # 32 MiB working budget fits v5e/v6e scoped limits and v7x's 64 MiB
    # physical VMEM with headroom; vmem_limit_bytes raised explicitly below.
    vmem_budget = 32 * 1024 * 1024
    weight_bytes = (w_item * (D * H1 + H1 * H2 + H2 * H3 + H3 * F)
                    + 4 * (H1 + H2 + H3 + F))
    buffers = max(2, int(x_buffers))
    per_row = (buffers * D * x_item        # multi-buffered x tile
               + 2 * F * 4                 # double-buffered out tile (f32)
               + 4 * (H1 + H2 + H3 + F))   # live intermediate activations
    avail = vmem_budget - 2 * weight_bytes - (2 << 20)   # margin for internals
    tb_max = max(32, (avail // per_row) // 32 * 32)
    TB = max(32, (int(min(tile_rows, tb_max)) // 32) * 32)

    # Lane-dense packing factor for the output (pack*F == 128 lanes).
    pack = 128 // F if (F < 128 and 128 % F == 0) else 1

    if B <= TB:
        # Single tile covering the whole (possibly tiny) batch: block shape ==
        # full array shape, so no (8,128) divisibility constraint and no pad.
        TB = B
        num_tiles = 1
        while pack > 1 and TB % pack != 0:
            pack //= 2
    else:
        # Multi-tile: TB multiple of 32 (int8 obs tiling) and of 8*pack
        # (sublane rule for the packed out block).  The last x tile may be
        # ragged; Pallas clips its DMA to the array bounds — x is never padded.
        step = max(32, 8 * pack)
        TB = max(step, (TB // step) * step)
        num_tiles = pl.cdiv(B, TB)
    B_pad = num_tiles * TB

    # ---------- specs ----------
    def resident(arr):
        # Same block every grid step -> DMA'd to VMEM once, reused by all tiles.
        return pl.BlockSpec(arr.shape, lambda i: (0, 0))

    x_spec_kwargs = {}
    if buffers != 2 and hasattr(pl, "Buffered"):
        # Sweepable: a 3rd buffer can cover exposed DMA at step boundaries.
        x_spec_kwargs["pipeline_mode"] = pl.Buffered(buffers)
    x_spec = pl.BlockSpec((TB, D), lambda i: (i, 0), **x_spec_kwargs)

    cost = pl.CostEstimate(
        flops=2 * B * (D * H1 + H1 * H2 + H2 * H3 + H3 * F),
        transcendentals=0,
        bytes_accessed=B * D * x_item + B * F * 4 + weight_bytes)

    compiler_params = pltpu.CompilerParams(
        dimension_semantics=_batch_axis_semantics(num_tiles),
        vmem_limit_bytes=40 * 1024 * 1024)

    def _run(p):
        out = pl.pallas_call(
            functools.partial(_mlp_kernel, p),
            out_shape=jax.ShapeDtypeStruct((B_pad // p, p * F), jnp.float32),
            grid=(num_tiles,),
            in_specs=[x_spec] + [resident(a) for a in flat_w],
            out_specs=pl.BlockSpec((TB // p, p * F), lambda i: (i, 0)),
            compiler_params=compiler_params,
            cost_estimate=cost,
        )(x, *flat_w)
        # Free row-major reshape back to (B_pad, F); drop ragged-tail rows.
        return out.reshape(B_pad, F)[:B]

    if pack > 1:
        try:
            return _run(pack)
        except Exception:
            # TODO(synk): some Mosaic versions may reject the in-kernel
            # (TB,F)->(TB//pack,pack*F) relayout; fall back to 32-lane stores.
            pass
    return _run(1)


def init_params(key, input_dim, features_dim=32):
    """PyTorch-style uniform fan-in init; weights stored (in, out)."""
    dims = [input_dim, H1, H2, H3, features_dim]
    params = {}
    for i in range(4):
        fan_in, fan_out = dims[i], dims[i + 1]
        key, kw, kb = jax.random.split(key, 3)
        bound = 1.0 / math.sqrt(float(fan_in))
        params[f"w{i+1}"] = jax.random.uniform(
            kw, (fan_in, fan_out), jnp.float32, minval=-bound, maxval=bound)
        params[f"b{i+1}"] = jax.random.uniform(
            kb, (1, fan_out), jnp.float32, minval=-bound, maxval=bound)
    return params


def reference_forward(observations, params):
    """Pure-JAX reference (f32)."""
    h = observations.reshape(observations.shape[0], -1).astype(jnp.float32)
    for i in range(4):
        h = jnp.maximum(h @ params[f"w{i+1}"] + params[f"b{i+1}"], 0.0)
    return h


if __name__ == "__main__":
    key = jax.random.PRNGKey(0)

    obs_shape = (4, 16)                       # observation_space.shape
    input_dim = math.prod(obs_shape)          # 64
    features_dim = 32

    key, k_obs, k_params, k_obs2 = jax.random.split(key, 4)
    params = init_params(k_params, input_dim, features_dim)

    # 1) tiny batch: single full-array tile, no padding of x anywhere
    obs1 = jax.random.normal(k_obs, (2,) + obs_shape, jnp.float32)
    out1 = jax.block_until_ready(mlp_extractor_forward(obs1, params))
    ref1 = reference_forward(obs1, params)
    assert out1.shape == (2, features_dim), out1.shape
    assert jnp.allclose(out1, ref1, atol=1e-5, rtol=1e-5), "mismatch (B=2)"

    # 2) multi-tile grid with a ragged last tile (B=80, TB=32 -> 3 tiles),
    #    resident weights, lane-dense packed output
    obs2 = jax.random.normal(k_obs2, (80,) + obs_shape, jnp.float32)
    out2 = jax.block_until_ready(mlp_extractor_forward(obs2, params, tile_rows=32))
    ref2 = reference_forward(obs2, params)
    assert out2.shape == (80, features_dim), out2.shape
    assert jnp.allclose(out2, ref2, atol=1e-5, rtol=1e-5), "mismatch (B=80)"

    # 3) optional bf16 MXU fast path (f32 accumulation) — smoke test only
    out3 = jax.block_until_ready(
        mlp_extractor_forward(obs2, params, tile_rows=32,
                              compute_dtype=jnp.bfloat16))
    assert out3.shape == (80, features_dim), out3.shape
    assert bool(jnp.isfinite(out3).all()), "non-finite bf16 output"

    print("KERNEL_OK")
</pallas_src>

<mosaic_0001>
module attributes {stable_mosaic.version = 11 : i64} {
  func.func @_mlp_kernel(%arg0: i32, %arg1: memref<2x64xf32, #tpu.memory_space<vmem>>, %arg2: memref<64x64xf32, #tpu.memory_space<vmem>>, %arg3: memref<1x64xf32, #tpu.memory_space<vmem>>, %arg4: memref<64x32xf32, #tpu.memory_space<vmem>>, %arg5: memref<1x32xf32, #tpu.memory_space<vmem>>, %arg6: memref<32x32xf32, #tpu.memory_space<vmem>>, %arg7: memref<1x32xf32, #tpu.memory_space<vmem>>, %arg8: memref<32x32xf32, #tpu.memory_space<vmem>>, %arg9: memref<1x32xf32, #tpu.memory_space<vmem>>, %arg10: memref<1x64xf32, #tpu.memory_space<vmem>>) attributes {dimension_semantics = [#tpu.dimension_semantics<parallel>], iteration_bounds = array<i64: 1>, scalar_prefetch = 0 : i64, scratch_operands = 0 : i64, tpu.core_type = #tpu.core_type<tc>, window_params = [{transform_indices = @transform_0, window_bounds = array<i64: 2, 64>}, {pipeline_mode = #tpu.pipeline_mode<synchronous>, transform_indices = @transform_1, window_bounds = array<i64: 64, 64>}, {pipeline_mode = #tpu.pipeline_mode<synchronous>, transform_indices = @transform_2, window_bounds = array<i64: 1, 64>}, {pipeline_mode = #tpu.pipeline_mode<synchronous>, transform_indices = @transform_3, window_bounds = array<i64: 64, 32>}, {pipeline_mode = #tpu.pipeline_mode<synchronous>, transform_indices = @transform_4, window_bounds = array<i64: 1, 32>}, {pipeline_mode = #tpu.pipeline_mode<synchronous>, transform_indices = @transform_5, window_bounds = array<i64: 32, 32>}, {pipeline_mode = #tpu.pipeline_mode<synchronous>, transform_indices = @transform_6, window_bounds = array<i64: 1, 32>}, {pipeline_mode = #tpu.pipeline_mode<synchronous>, transform_indices = @transform_7, window_bounds = array<i64: 32, 32>}, {pipeline_mode = #tpu.pipeline_mode<synchronous>, transform_indices = @transform_8, window_bounds = array<i64: 1, 32>}, {transform_indices = @transform_9, window_bounds = array<i64: 1, 64>}]} {
    %c0 = arith.constant 0 : index
    %c0_0 = arith.constant 0 : index
    %0 = vector.load %arg1[%c0, %c0_0] : memref<2x64xf32, #tpu.memory_space<vmem>>, vector<2x64xf32>
    %c0_1 = arith.constant 0 : index
    %c0_2 = arith.constant 0 : index
    %1 = vector.load %arg2[%c0_1, %c0_2] : memref<64x64xf32, #tpu.memory_space<vmem>>, vector<64x64xf32>
    %cst = arith.constant dense<0.000000e+00> : vector<2x64xf32>
    %2 = tpu.matmul %0, %1, %cst {dimension_numbers = #tpu.dot_dimension_numbers<[1], [0], [0], [1], [0, 0, 1, 1], [], []>} : vector<2x64xf32>, vector<64x64xf32>, vector<2x64xf32> -> vector<2x64xf32>
    %c0_3 = arith.constant 0 : index
    %c0_4 = arith.constant 0 : index
    %3 = vector.load %arg3[%c0_3, %c0_4] : memref<1x64xf32, #tpu.memory_space<vmem>>, vector<1x64xf32>
    %4 = vector.broadcast %3 : vector<1x64xf32> to vector<2x64xf32>
    %5 = arith.addf %2, %4 : vector<2x64xf32>
    %cst_5 = arith.constant 0.000000e+00 : f32
    %6 = vector.broadcast %cst_5 : f32 to vector<2x64xf32>
    %7 = arith.maximumf %5, %6 : vector<2x64xf32>
    %c0_6 = arith.constant 0 : index
    %c0_7 = arith.constant 0 : index
    %8 = vector.load %arg4[%c0_6, %c0_7] : memref<64x32xf32, #tpu.memory_space<vmem>>, vector<64x32xf32>
    %cst_8 = arith.constant dense<0.000000e+00> : vector<2x32xf32>
    %9 = tpu.matmul %7, %8, %cst_8 {dimension_numbers = #tpu.dot_dimension_numbers<[1], [0], [0], [1], [0, 0, 1, 1], [], []>} : vector<2x64xf32>, vector<64x32xf32>, vector<2x32xf32> -> vector<2x32xf32>
    %c0_9 = arith.constant 0 : index
    %c0_10 = arith.constant 0 : index
    %10 = vector.load %arg5[%c0_9, %c0_10] : memref<1x32xf32, #tpu.memory_space<vmem>>, vector<1x32xf32>
    %11 = vector.broadcast %10 : vector<1x32xf32> to vector<2x32xf32>
    %12 = arith.addf %9, %11 : vector<2x32xf32>
    %cst_11 = arith.constant 0.000000e+00 : f32
    %13 = vector.broadcast %cst_11 : f32 to vector<2x32xf32>
    %14 = arith.maximumf %12, %13 : vector<2x32xf32>
    %c0_12 = arith.constant 0 : index
    %c0_13 = arith.constant 0 : index
    %15 = vector.load %arg6[%c0_12, %c0_13] : memref<32x32xf32, #tpu.memory_space<vmem>>, vector<32x32xf32>
    %cst_14 = arith.constant dense<0.000000e+00> : vector<2x32xf32>
    %16 = tpu.matmul %14, %15, %cst_14 {dimension_numbers = #tpu.dot_dimension_numbers<[1], [0], [0], [1], [0, 0, 1, 1], [], []>} : vector<2x32xf32>, vector<32x32xf32>, vector<2x32xf32> -> vector<2x32xf32>
    %c0_15 = arith.constant 0 : index
    %c0_16 = arith.constant 0 : index
    %17 = vector.load %arg7[%c0_15, %c0_16] : memref<1x32xf32, #tpu.memory_space<vmem>>, vector<1x32xf32>
    %18 = vector.broadcast %17 : vector<1x32xf32> to vector<2x32xf32>
    %19 = arith.addf %16, %18 : vector<2x32xf32>
    %cst_17 = arith.constant 0.000000e+00 : f32
    %20 = vector.broadcast %cst_17 : f32 to vector<2x32xf32>
    %21 = arith.maximumf %19, %20 : vector<2x32xf32>
    %c0_18 = arith.constant 0 : index
    %c0_19 = arith.constant 0 : index
    %22 = vector.load %arg8[%c0_18, %c0_19] : memref<32x32xf32, #tpu.memory_space<vmem>>, vector<32x32xf32>
    %cst_20 = arith.constant dense<0.000000e+00> : vector<2x32xf32>
    %23 = tpu.matmul %21, %22, %cst_20 {dimension_numbers = #tpu.dot_dimension_numbers<[1], [0], [0], [1], [0, 0, 1, 1], [], []>} : vector<2x32xf32>, vector<32x32xf32>, vector<2x32xf32> -> vector<2x32xf32>
    %c0_21 = arith.constant 0 : index
    %c0_22 = arith.constant 0 : index
    %24 = vector.load %arg9[%c0_21, %c0_22] : memref<1x32xf32, #tpu.memory_space<vmem>>, vector<1x32xf32>
    %25 = vector.broadcast %24 : vector<1x32xf32> to vector<2x32xf32>
    %26 = arith.addf %23, %25 : vector<2x32xf32>
    %cst_23 = arith.constant 0.000000e+00 : f32
    %27 = vector.broadcast %cst_23 : f32 to vector<2x32xf32>
    %28 = arith.maximumf %26, %27 : vector<2x32xf32>
    %29 = vector.shape_cast %28 : vector<2x32xf32> to vector<1x64xf32>
    %c0_24 = arith.constant 0 : index
    %c0_25 = arith.constant 0 : index
    %30 = vector.load %arg10[%c0_24, %c0_25] : memref<1x64xf32, #tpu.memory_space<vmem>>, vector<1x64xf32>
    tpu.vector_store %arg10[%c0_24, %c0_25], %29 {strides = array<i32>} : memref<1x64xf32, #tpu.memory_space<vmem>>, vector<1x64xf32>,
    return
  }
  func.func @transform_0(%arg0: i32) -> (i32, i32) {
    %c0_i32 = arith.constant 0 : i32
    %c0_i32_0 = arith.constant 0 : i32
    return %arg0, %c0_i32 : i32, i32
  }
  func.func @transform_1(%arg0: i32) -> (i32, i32) {
    %c0_i32 = arith.constant 0 : i32
    %c0_i32_0 = arith.constant 0 : i32
    %c0_i32_1 = arith.constant 0 : i32
    return %c0_i32, %c0_i32_0 : i32, i32
  }
  func.func @transform_2(%arg0: i32) -> (i32, i32) {
    %c0_i32 = arith.constant 0 : i32
    %c0_i32_0 = arith.constant 0 : i32
    %c0_i32_1 = arith.constant 0 : i32
    return %c0_i32, %c0_i32_0 : i32, i32
  }
  func.func @transform_3(%arg0: i32) -> (i32, i32) {
    %c0_i32 = arith.constant 0 : i32
    %c0_i32_0 = arith.constant 0 : i32
    %c0_i32_1 = arith.constant 0 : i32
    return %c0_i32, %c0_i32_0 : i32, i32
  }
  func.func @transform_4(%arg0: i32) -> (i32, i32) {
    %c0_i32 = arith.constant 0 : i32
    %c0_i32_0 = arith.constant 0 : i32
    %c0_i32_1 = arith.constant 0 : i32
    return %c0_i32, %c0_i32_0 : i32, i32
  }
  func.func @transform_5(%arg0: i32) -> (i32, i32) {
    %c0_i32 = arith.constant 0 : i32
    %c0_i32_0 = arith.constant 0 : i32
    %c0_i32_1 = arith.constant 0 : i32
    return %c0_i32, %c0_i32_0 : i32, i32
  }
  func.func @transform_6(%arg0: i32) -> (i32, i32) {
    %c0_i32 = arith.constant 0 : i32
    %c0_i32_0 = arith.constant 0 : i32
    %c0_i32_1 = arith.constant 0 : i32
    return %c0_i32, %c0_i32_0 : i32, i32
  }
  func.func @transform_7(%arg0: i32) -> (i32, i32) {
    %c0_i32 = arith.constant 0 : i32
    %c0_i32_0 = arith.constant 0 : i32
    %c0_i32_1 = arith.constant 0 : i32
    return %c0_i32, %c0_i32_0 : i32, i32
  }
  func.func @transform_8(%arg0: i32) -> (i32, i32) {
    %c0_i32 = arith.constant 0 : i32
    %c0_i32_0 = arith.constant 0 : i32
    %c0_i32_1 = arith.constant 0 : i32
    return %c0_i32, %c0_i32_0 : i32, i32
  }
  func.func @transform_9(%arg0: i32) -> (i32, i32) {
    %c0_i32 = arith.constant 0 : i32
    %c0_i32_0 = arith.constant 0 : i32
    return %arg0, %c0_i32 : i32, i32
  }
}

module attributes {stable_mosaic.version = 11 : i64} {
  func.func @_mlp_kernel(%arg0: i32, %arg1: memref<2x64xf32, #tpu.memory_space<vmem>>, %arg2: memref<64x64xf32, #tpu.memory_space<vmem>>, %arg3: memref<1x64xf32, #tpu.memory_space<vmem>>, %arg4: memref<64x32xf32, #tpu.memory_space<vmem>>, %arg5: memref<1x32xf32, #tpu.memory_space<vmem>>, %arg6: memref<32x32xf32, #tpu.memory_space<vmem>>, %arg7: memref<1x32xf32, #tpu.memory_space<vmem>>, %arg8: memref<32x32xf32, #tpu.memory_space<vmem>>, %arg9: memref<1x32xf32, #tpu.memory_space<vmem>>, %arg10: memref<2x32xf32, #tpu.memory_space<vmem>>) attributes {dimension_semantics = [#tpu.dimension_semantics<parallel>], iteration_bounds = array<i64: 1>, scalar_prefetch = 0 : i64, scratch_operands = 0 : i64, tpu.core_type = #tpu.core_type<tc>, window_params = [{transform_indices = @transform_0, window_bounds = array<i64: 2, 64>}, {pipeline_mode = #tpu.pipeline_mode<synchronous>, transform_indices = @transform_1, window_bounds = array<i64: 64, 64>}, {pipeline_mode = #tpu.pipeline_mode<synchronous>, transform_indices = @transform_2, window_bounds = array<i64: 1, 64>}, {pipeline_mode = #tpu.pipeline_mode<synchronous>, transform_indices = @transform_3, window_bounds = array<i64: 64, 32>}, {pipeline_mode = #tpu.pipeline_mode<synchronous>, transform_indices = @transform_4, window_bounds = array<i64: 1, 32>}, {pipeline_mode = #tpu.pipeline_mode<synchronous>, transform_indices = @transform_5, window_bounds = array<i64: 32, 32>}, {pipeline_mode = #tpu.pipeline_mode<synchronous>, transform_indices = @transform_6, window_bounds = array<i64: 1, 32>}, {pipeline_mode = #tpu.pipeline_mode<synchronous>, transform_indices = @transform_7, window_bounds = array<i64: 32, 32>}, {pipeline_mode = #tpu.pipeline_mode<synchronous>, transform_indices = @transform_8, window_bounds = array<i64: 1, 32>}, {transform_indices = @transform_9, window_bounds = array<i64: 2, 32>}]} {
    %c0 = arith.constant 0 : index
    %c0_0 = arith.constant 0 : index
    %0 = vector.load %arg1[%c0, %c0_0] : memref<2x64xf32, #tpu.memory_space<vmem>>, vector<2x64xf32>
    %c0_1 = arith.constant 0 : index
    %c0_2 = arith.constant 0 : index
    %1 = vector.load %arg2[%c0_1, %c0_2] : memref<64x64xf32, #tpu.memory_space<vmem>>, vector<64x64xf32>
    %cst = arith.constant dense<0.000000e+00> : vector<2x64xf32>
    %2 = tpu.matmul %0, %1, %cst {dimension_numbers = #tpu.dot_dimension_numbers<[1], [0], [0], [1], [0, 0, 1, 1], [], []>} : vector<2x64xf32>, vector<64x64xf32>, vector<2x64xf32> -> vector<2x64xf32>
    %c0_3 = arith.constant 0 : index
    %c0_4 = arith.constant 0 : index
    %3 = vector.load %arg3[%c0_3, %c0_4] : memref<1x64xf32, #tpu.memory_space<vmem>>, vector<1x64xf32>
    %4 = vector.broadcast %3 : vector<1x64xf32> to vector<2x64xf32>
    %5 = arith.addf %2, %4 : vector<2x64xf32>
    %cst_5 = arith.constant 0.000000e+00 : f32
    %6 = vector.broadcast %cst_5 : f32 to vector<2x64xf32>
    %7 = arith.maximumf %5, %6 : vector<2x64xf32>
    %c0_6 = arith.constant 0 : index
    %c0_7 = arith.constant 0 : index
    %8 = vector.load %arg4[%c0_6, %c0_7] : memref<64x32xf32, #tpu.memory_space<vmem>>, vector<64x32xf32>
    %cst_8 = arith.constant dense<0.000000e+00> : vector<2x32xf32>
    %9 = tpu.matmul %7, %8, %cst_8 {dimension_numbers = #tpu.dot_dimension_numbers<[1], [0], [0], [1], [0, 0, 1, 1], [], []>} : vector<2x64xf32>, vector<64x32xf32>, vector<2x32xf32> -> vector<2x32xf32>
    %c0_9 = arith.constant 0 : index
    %c0_10 = arith.constant 0 : index
    %10 = vector.load %arg5[%c0_9, %c0_10] : memref<1x32xf32, #tpu.memory_space<vmem>>, vector<1x32xf32>
    %11 = vector.broadcast %10 : vector<1x32xf32> to vector<2x32xf32>
    %12 = arith.addf %9, %11 : vector<2x32xf32>
    %cst_11 = arith.constant 0.000000e+00 : f32
    %13 = vector.broadcast %cst_11 : f32 to vector<2x32xf32>
    %14 = arith.maximumf %12, %13 : vector<2x32xf32>
    %c0_12 = arith.constant 0 : index
    %c0_13 = arith.constant 0 : index
    %15 = vector.load %arg6[%c0_12, %c0_13] : memref<32x32xf32, #tpu.memory_space<vmem>>, vector<32x32xf32>
    %cst_14 = arith.constant dense<0.000000e+00> : vector<2x32xf32>
    %16 = tpu.matmul %14, %15, %cst_14 {dimension_numbers = #tpu.dot_dimension_numbers<[1], [0], [0], [1], [0, 0, 1, 1], [], []>} : vector<2x32xf32>, vector<32x32xf32>, vector<2x32xf32> -> vector<2x32xf32>
    %c0_15 = arith.constant 0 : index
    %c0_16 = arith.constant 0 : index
    %17 = vector.load %arg7[%c0_15, %c0_16] : memref<1x32xf32, #tpu.memory_space<vmem>>, vector<1x32xf32>
    %18 = vector.broadcast %17 : vector<1x32xf32> to vector<2x32xf32>
    %19 = arith.addf %16, %18 : vector<2x32xf32>
    %cst_17 = arith.constant 0.000000e+00 : f32
    %20 = vector.broadcast %cst_17 : f32 to vector<2x32xf32>
    %21 = arith.maximumf %19, %20 : vector<2x32xf32>
    %c0_18 = arith.constant 0 : index
    %c0_19 = arith.constant 0 : index
    %22 = vector.load %arg8[%c0_18, %c0_19] : memref<32x32xf32, #tpu.memory_space<vmem>>, vector<32x32xf32>
    %cst_20 = arith.constant dense<0.000000e+00> : vector<2x32xf32>
    %23 = tpu.matmul %21, %22, %cst_20 {dimension_numbers = #tpu.dot_dimension_numbers<[1], [0], [0], [1], [0, 0, 1, 1], [], []>} : vector<2x32xf32>, vector<32x32xf32>, vector<2x32xf32> -> vector<2x32xf32>
    %c0_21 = arith.constant 0 : index
    %c0_22 = arith.constant 0 : index
    %24 = vector.load %arg9[%c0_21, %c0_22] : memref<1x32xf32, #tpu.memory_space<vmem>>, vector<1x32xf32>
    %25 = vector.broadcast %24 : vector<1x32xf32> to vector<2x32xf32>
    %26 = arith.addf %23, %25 : vector<2x32xf32>
    %cst_23 = arith.constant 0.000000e+00 : f32
    %27 = vector.broadcast %cst_23 : f32 to vector<2x32xf32>
    %28 = arith.maximumf %26, %27 : vector<2x32xf32>
    %c0_24 = arith.constant 0 : index
    %c0_25 = arith.constant 0 : index
    %29 = vector.load %arg10[%c0_24, %c0_25] : memref<2x32xf32, #tpu.memory_space<vmem>>, vector<2x32xf32>
    tpu.vector_store %arg10[%c0_24, %c0_25], %28 {strides = array<i32>} : memref<2x32xf32, #tpu.memory_space<vmem>>, vector<2x32xf32>,
    return
  }
  func.func @transform_0(%arg0: i32) -> (i32, i32) {
    %c0_i32 = arith.constant 0 : i32
    %c0_i32_0 = arith.constant 0 : i32
    return %arg0, %c0_i32 : i32, i32
  }
  func.func @transform_1(%arg0: i32) -> (i32, i32) {
    %c0_i32 = arith.constant 0 : i32
    %c0_i32_0 = arith.constant 0 : i32
    %c0_i32_1 = arith.constant 0 : i32
    return %c0_i32, %c0_i32_0 : i32, i32
  }
  func.func @transform_2(%arg0: i32) -> (i32, i32) {
    %c0_i32 = arith.constant 0 : i32
    %c0_i32_0 = arith.constant 0 : i32
    %c0_i32_1 = arith.constant 0 : i32
    return %c0_i32, %c0_i32_0 : i32, i32
  }
  func.func @transform_3(%arg0: i32) -> (i32, i32) {
    %c0_i32 = arith.constant 0 : i32
    %c0_i32_0 = arith.constant 0 : i32
    %c0_i32_1 = arith.constant 0 : i32
    return %c0_i32, %c0_i32_0 : i32, i32
  }
  func.func @transform_4(%arg0: i32) -> (i32, i32) {
    %c0_i32 = arith.constant 0 : i32
    %c0_i32_0 = arith.constant 0 : i32
    %c0_i32_1 = arith.constant 0 : i32
    return %c0_i32, %c0_i32_0 : i32, i32
  }
  func.func @transform_5(%arg0: i32) -> (i32, i32) {
    %c0_i32 = arith.constant 0 : i32
    %c0_i32_0 = arith.constant 0 : i32
    %c0_i32_1 = arith.constant 0 : i32
    return %c0_i32, %c0_i32_0 : i32, i32
  }
  func.func @transform_6(%arg0: i32) -> (i32, i32) {
    %c0_i32 = arith.constant 0 : i32
    %c0_i32_0 = arith.constant 0 : i32
    %c0_i32_1 = arith.constant 0 : i32
    return %c0_i32, %c0_i32_0 : i32, i32
  }
  func.func @transform_7(%arg0: i32) -> (i32, i32) {
    %c0_i32 = arith.constant 0 : i32
    %c0_i32_0 = arith.constant 0 : i32
    %c0_i32_1 = arith.constant 0 : i32
    return %c0_i32, %c0_i32_0 : i32, i32
  }
  func.func @transform_8(%arg0: i32) -> (i32, i32) {
    %c0_i32 = arith.constant 0 : i32
    %c0_i32_0 = arith.constant 0 : i32
    %c0_i32_1 = arith.constant 0 : i32
    return %c0_i32, %c0_i32_0 : i32, i32
  }
  func.func @transform_9(%arg0: i32) -> (i32, i32) {
    %c0_i32 = arith.constant 0 : i32
    %c0_i32_0 = arith.constant 0 : i32
    return %arg0, %c0_i32 : i32, i32
  }
}

</mosaic_0001>

<llo_original>
// kernel: tpu_custom_call.1
$region0: #{tpu_custom_call.1}
  #allocation0 [shape = 'u32[]', space=smem, size = 0x4, offset = 0x4, fixed_abs, tag = 'smem constant byte address 0x4 - core index']
  #allocation1 [shape = 'u32[144,128]{1,0:T(1,128)}', space=vmem, size = 0x12000, scoped, tag = 'internal scratch']
  %s0 = inlined_call_operand.hbm [shape: f32[2,64], index: 0, kind: input, shape index: {}]
  %s1 = inlined_call_operand.vmem [shape: f32[64,64], index: 1, kind: input, shape index: {}]
  %s2 = inlined_call_operand.vmem [shape: f32[1,64], index: 2, kind: input, shape index: {}]
  %s3 = inlined_call_operand.vmem [shape: f32[64,32], index: 3, kind: input, shape index: {}]
  %s4 = inlined_call_operand.vmem [shape: f32[1,32], index: 4, kind: input, shape index: {}]
  %s5 = inlined_call_operand.vmem [shape: f32[32,32], index: 5, kind: input, shape index: {}]
  %s6 = inlined_call_operand.vmem [shape: f32[1,32], index: 6, kind: input, shape index: {}]
  %s7 = inlined_call_operand.hbm [shape: f32[32,32], index: 7, kind: input, shape index: {}]
  %s8 = inlined_call_operand.vmem [shape: f32[1,32], index: 8, kind: input, shape index: {}]
  %s9 = inlined_call_operand.hbm [shape: f32[2,32], index: 9, kind: output, shape index: {}]
  %s10 = sld [smem:[#allocation0]]
  $region54: #{tpu_custom_call.1} parent=0
    _
  %s12 = ssub.s32 1, %s10
  %s13 = scalar_select 0, %s12, %s10
  $region1: #{tpu_custom_call.1} parent=0
    #allocation2 [shape = 'u8[1024]{0}', space=vmem, size = 0x400, scoped, tag = 'input window, operand 0, single buffered']
    #allocation3 [shape = 's32[1]{0}', space=sflag, size = 0x4, scoped, tag = 'scoped memory for tpu_custom_call.1']
    #allocation4 [shape = 's32[1]{0}', space=sflag, size = 0x4, scoped, tag = 'scoped memory for tpu_custom_call.1']
    #allocation5 [shape = 'u8[16384]{0}', space=vmem, size = 0x4000, scoped, tag = 'input window, operand 7, single buffered']
    #allocation6 [shape = 's32[1]{0}', space=sflag, size = 0x4, scoped, tag = 'scoped memory for tpu_custom_call.1']
    #allocation7 [shape = 'u8[1024]{0}', space=vmem, size = 0x400, scoped, tag = 'output window, operand 0, single buffered']
    %14 = vsyncpa [#allocation3], 0
    %15 = vsyncpa [#allocation6], 0
    %16 = vsyncpa [#allocation4], 0
    // Predicated region
    $region2: #{tpu_custom_call.1} parent=1 // pred_check
      _
    $region3: #{tpu_custom_call.1} parent=1 // pred_check_branch
      %18 = sbr.rel (0) target = $region5
    $region4: #{tpu_custom_call.1} parent=1 // pred_region
      %s20 = ssub.s32 32, 32
      %21 = vsyncadd [#allocation3], %s20
      %s23 = sshll.u32 [#allocation2], 4
      %s24 = int_to_ptr.vmem [resolvable:$true] %s23
      %26 = dma.hbm_to_vmem [thread:$0]  %s0, 32, %s24, [#allocation3]
    $region5: #{tpu_custom_call.1} parent=1 // pred_fallthru
      _
    // Predicated region
    $region6: #{tpu_custom_call.1} parent=1 // pred_check
      _
    $region7: #{tpu_custom_call.1} parent=1 // pred_check_branch
      %28 = sbr.rel (0) target = $region9
    $region8: #{tpu_custom_call.1} parent=1 // pred_region
      _
    $region9: #{tpu_custom_call.1} parent=1 // pred_fallthru
      _
    // Predicated region
    $region10: #{tpu_custom_call.1} parent=1 // pred_check
      _
    $region11: #{tpu_custom_call.1} parent=1 // pred_check_branch
      %30 = sbr.rel (0) target = $region13
    $region12: #{tpu_custom_call.1} parent=1 // pred_region
      _
    $region13: #{tpu_custom_call.1} parent=1 // pred_fallthru
      _
    // Predicated region
    $region14: #{tpu_custom_call.1} parent=1 // pred_check
      _
    $region15: #{tpu_custom_call.1} parent=1 // pred_check_branch
      %32 = sbr.rel (0) target = $region17
    $region16: #{tpu_custom_call.1} parent=1 // pred_region
      _
    $region17: #{tpu_custom_call.1} parent=1 // pred_fallthru
      _
    // Predicated region
    $region18: #{tpu_custom_call.1} parent=1 // pred_check
      _
    $region19: #{tpu_custom_call.1} parent=1 // pred_check_branch
      %34 = sbr.rel (0) target = $region21
    $region20: #{tpu_custom_call.1} parent=1 // pred_region
      _
    $region21: #{tpu_custom_call.1} parent=1 // pred_fallthru
      _
    // Predicated region
    $region22: #{tpu_custom_call.1} parent=1 // pred_check
      _
    $region23: #{tpu_custom_call.1} parent=1 // pred_check_branch
      %36 = sbr.rel (0) target = $region25
    $region24: #{tpu_custom_call.1} parent=1 // pred_region
      _
    $region25: #{tpu_custom_call.1} parent=1 // pred_fallthru
      _
    // Predicated region
    $region26: #{tpu_custom_call.1} parent=1 // pred_check
      _
    $region27: #{tpu_custom_call.1} parent=1 // pred_check_branch
      %38 = sbr.rel (0) target = $region29
    $region28: #{tpu_custom_call.1} parent=1 // pred_region
      _
    $region29: #{tpu_custom_call.1} parent=1 // pred_fallthru
      _
    // Predicated region
    $region30: #{tpu_custom_call.1} parent=1 // pred_check
      _
    $region31: #{tpu_custom_call.1} parent=1 // pred_check_branch
      %40 = sbr.rel (0) target = $region33
    $region32: #{tpu_custom_call.1} parent=1 // pred_region
      %s42 = ssub.s32 512, 512
      %43 = vsyncadd [#allocation6], %s42
      %s44 = sshll.u32 [#allocation5], 4
      %s45 = int_to_ptr.vmem [resolvable:$true] %s44
      %50 = dma.hbm_to_vmem [thread:$0]  %s7, 512, %s45, [#allocation6], 128, 128, 8
    $region33: #{tpu_custom_call.1} parent=1 // pred_fallthru
      _
    // Predicated region
    $region34: #{tpu_custom_call.1} parent=1 // pred_check
      _
    $region35: #{tpu_custom_call.1} parent=1 // pred_check_branch
      %52 = sbr.rel (0) target = $region37
    $region36: #{tpu_custom_call.1} parent=1 // pred_region
      _
    $region37: #{tpu_custom_call.1} parent=1 // pred_fallthru
      _
    // Predicated region
    $region38: #{tpu_custom_call.1} parent=1 // pred_check
      _
    $region39: #{tpu_custom_call.1} parent=1 // pred_check_branch
      %54 = sbr.rel (0) target = $region41
    $region40: #{tpu_custom_call.1} parent=1 // pred_region
      %55 = dma.done [#allocation3], 32
    $region41: #{tpu_custom_call.1} parent=1 // pred_fallthru
      _
    // Predicated region
    $region42: #{tpu_custom_call.1} parent=1 // pred_check
      _
    $region43: #{tpu_custom_call.1} parent=1 // pred_check_branch
      %57 = sbr.rel (0) target = $region45
    $region44: #{tpu_custom_call.1} parent=1 // pred_region
      %58 = dma.done [#allocation6], 512
    $region45: #{tpu_custom_call.1} parent=1 // pred_fallthru
      _
    %v59 = vld [vmem:[#allocation2] sm:$0x3]
    %v60 = vld [vmem:[%s1] sm:$0xff]
    %v61 = vld [vmem:[%s1 + $0x8] sm:$0xff]
    %v62 = vld [vmem:[%s1 + $0x10] sm:$0xff]
    %v63 = vld [vmem:[%s1 + $0x18] sm:$0xff]
    %v64 = vld [vmem:[%s1 + $0x20] sm:$0xff]
    %v65 = vld [vmem:[%s1 + $0x28] sm:$0xff]
    %v66 = vld [vmem:[%s1 + $0x30] sm:$0xff]
    %v67 = vld [vmem:[%s1 + $0x38] sm:$0xff]
    %v68 = vld [vmem:[%s2] sm:$0x1]
    %v70 = vlaneseq
    %v71 = vshrl.u32 %v70, 7
    %v72 = vsub.s32 0, %v71
    %v73 = vrot.slane %v68, %v72
    %vm75 = vcmask 523264
    %v77 = vsel %vm75, %v59, 0
    %79 = vmatprep.subr.mxu0 0.0
    %80 = vmatpush1.msra.mxu0 0.0
    %81 = vmatprep.subr.mxu0 0.0
    %82 = vmatpush1.msra.mxu0 0.0
    %83 = vmatprep.subr.mxu0 0.0
    %84 = vmatpush1.msra.mxu0 0.0
    %85 = vmatprep.subr.mxu0 0.0
    %86 = vmatpush1.msra.mxu0 0.0
    %87 = vmatprep.subr.mxu0 0.0
    %88 = vmatpush1.msra.mxu0 0.0
    %89 = vmatprep.subr.mxu0 0.0
    %90 = vmatpush1.msra.mxu0 0.0
    %91 = vmatprep.subr.mxu0 0.0
    %92 = vmatpush1.msra.mxu0 0.0
    %93 = vmatprep.subr.mxu0 0.0
    %94 = vmatpush1.msra.mxu0 0.0
    %95 = vmatprep.subr.mxu0 0.0
    %96 = vmatpush1.msra.mxu0 %v67
    %97 = vmatprep.subr.mxu0 0.0
    %98 = vmatpush1.msra.mxu0 %v66
    %99 = vmatprep.subr.mxu0 0.0
    %100 = vmatpush1.msra.mxu0 %v65
    %101 = vmatprep.subr.mxu0 0.0
    %102 = vmatpush1.msra.mxu0 %v64
    %103 = vmatprep.subr.mxu0 0.0
    %104 = vmatpush1.msra.mxu0 %v63
    %105 = vmatprep.subr.mxu0 0.0
    %106 = vmatpush1.msra.mxu0 %v62
    %107 = vmatprep.subr.mxu0 0.0
    %108 = vmatpush1.msra.mxu0 %v61
    %109 = vmatprep.subr.mxu0 0.0
    %110 = vmatpush1.msra.mxu0 %v60
    %111 = vmatprep.subr.mxu0 0.0
    %112 = vmatpush2.msra.mxu0 0.0
    %113 = vmatprep.subr.mxu0 0.0
    %114 = vmatpush2.msra.mxu0 0.0
    %115 = vmatprep.subr.mxu0 0.0
    %116 = vmatpush2.msra.mxu0 0.0
    %117 = vmatprep.subr.mxu0 0.0
    %118 = vmatpush2.msra.mxu0 0.0
    %119 = vmatprep.subr.mxu0 0.0
    %120 = vmatpush2.msra.mxu0 0.0
    %121 = vmatprep.subr.mxu0 0.0
    %122 = vmatpush2.msra.mxu0 0.0
    %123 = vmatprep.subr.mxu0 0.0
    %124 = vmatpush2.msra.mxu0 0.0
    %125 = vmatprep.subr.mxu0 0.0
    %126 = vmatpush2.msra.mxu0 0.0
    %127 = vmatprep.subr.mxu0 0.0
    %128 = vmatpush2.msra.mxu0 0.0
    %129 = vmatprep.subr.mxu0 0.0
    %130 = vmatpush2.msra.mxu0 0.0
    %131 = vmatprep.subr.mxu0 0.0
    %132 = vmatpush2.msra.mxu0 0.0
    %133 = vmatprep.subr.mxu0 0.0
    %134 = vmatpush2.msra.mxu0 0.0
    %135 = vmatprep.subr.mxu0 0.0
    %136 = vmatpush2.msra.mxu0 0.0
    %137 = vmatprep.subr.mxu0 0.0
    %138 = vmatpush2.msra.mxu0 0.0
    %139 = vmatprep.subr.mxu0 0.0
    %140 = vmatpush2.msra.mxu0 0.0
    %141 = vmatprep.subr.mxu0 0.0
    %142 = vmatpush2.msra.mxu0 0.0
    %143 = vmatprep.mubr.f32.mxu0 0.0
    %144 = vmatmul.mubr.f32.gmra.mxu0 %v77
    %v145 = vpop.f32.mrf.mxu0
    %v146 = vadd.f32 %v73, %v145
    %v147 = vpop.f32.mrf.mxu0
    %148 = vdwg.mxu0
    %v149 = vmax.f32 %v146, 0.0
    %v150 = vld [vmem:[%s3] sm:$0xff]
    %v151 = vld [vmem:[%s3 + $0x8] sm:$0xff]
    %v152 = vld [vmem:[%s3 + $0x10] sm:$0xff]
    %v153 = vld [vmem:[%s3 + $0x18] sm:$0xff]
    %v154 = vld [vmem:[%s3 + $0x20] sm:$0xff]
    %v155 = vld [vmem:[%s3 + $0x28] sm:$0xff]
    %v156 = vld [vmem:[%s3 + $0x30] sm:$0xff]
    %v157 = vld [vmem:[%s3 + $0x38] sm:$0xff]
    %v158 = vld [vmem:[%s4] sm:$0x1]
    %v160 = vlaneseq
    %v161 = vshrl.u32 %v160, 7
    %v162 = vsub.s32 0, %v161
    %v163 = vrot.slane %v158, %v162
    %v166 = vsel %vm75, %v149, 0
    %168 = vmatprep.subr.mxu0 0.0
    %169 = vmatpush1.msra.mxu0 0.0
    %170 = vmatprep.subr.mxu0 0.0
    %171 = vmatpush1.msra.mxu0 0.0
    %172 = vmatprep.subr.mxu0 0.0
    %173 = vmatpush1.msra.mxu0 0.0
    %174 = vmatprep.subr.mxu0 0.0
    %175 = vmatpush1.msra.mxu0 0.0
    %176 = vmatprep.subr.mxu0 0.0
    %177 = vmatpush1.msra.mxu0 0.0
    %178 = vmatprep.subr.mxu0 0.0
    %179 = vmatpush1.msra.mxu0 0.0
    %180 = vmatprep.subr.mxu0 0.0
    %181 = vmatpush1.msra.mxu0 0.0
    %182 = vmatprep.subr.mxu0 0.0
    %183 = vmatpush1.msra.mxu0 0.0
    %184 = vmatprep.subr.mxu0 0.0
    %185 = vmatpush1.msra.mxu0 %v157
    %186 = vmatprep.subr.mxu0 0.0
    %187 = vmatpush1.msra.mxu0 %v156
    %188 = vmatprep.subr.mxu0 0.0
    %189 = vmatpush1.msra.mxu0 %v155
    %190 = vmatprep.subr.mxu0 0.0
    %191 = vmatpush1.msra.mxu0 %v154
    %192 = vmatprep.subr.mxu0 0.0
    %193 = vmatpush1.msra.mxu0 %v153
    %194 = vmatprep.subr.mxu0 0.0
    %195 = vmatpush1.msra.mxu0 %v152
    %196 = vmatprep.subr.mxu0 0.0
    %197 = vmatpush1.msra.mxu0 %v151
    %198 = vmatprep.subr.mxu0 0.0
    %199 = vmatpush1.msra.mxu0 %v150
    %200 = vmatprep.subr.mxu0 0.0
    %201 = vmatpush2.msra.mxu0 0.0
    %202 = vmatprep.subr.mxu0 0.0
    %203 = vmatpush2.msra.mxu0 0.0
    %204 = vmatprep.subr.mxu0 0.0
    %205 = vmatpush2.msra.mxu0 0.0
    %206 = vmatprep.subr.mxu0 0.0
    %207 = vmatpush2.msra.mxu0 0.0
    %208 = vmatprep.subr.mxu0 0.0
    %209 = vmatpush2.msra.mxu0 0.0
    %210 = vmatprep.subr.mxu0 0.0
    %211 = vmatpush2.msra.mxu0 0.0
    %212 = vmatprep.subr.mxu0 0.0
    %213 = vmatpush2.msra.mxu0 0.0
    %214 = vmatprep.subr.mxu0 0.0
    %215 = vmatpush2.msra.mxu0 0.0
    %216 = vmatprep.subr.mxu0 0.0
    %217 = vmatpush2.msra.mxu0 0.0
    %218 = vmatprep.subr.mxu0 0.0
    %219 = vmatpush2.msra.mxu0 0.0
    %220 = vmatprep.subr.mxu0 0.0
    %221 = vmatpush2.msra.mxu0 0.0
    %222 = vmatprep.subr.mxu0 0.0
    %223 = vmatpush2.msra.mxu0 0.0
    %224 = vmatprep.subr.mxu0 0.0
    %225 = vmatpush2.msra.mxu0 0.0
    %226 = vmatprep.subr.mxu0 0.0
    %227 = vmatpush2.msra.mxu0 0.0
    %228 = vmatprep.subr.mxu0 0.0
    %229 = vmatpush2.msra.mxu0 0.0
    %230 = vmatprep.subr.mxu0 0.0
    %231 = vmatpush2.msra.mxu0 0.0
    %232 = vmatprep.mubr.f32.mxu0 0.0
    %233 = vmatmul.mubr.f32.gmra.mxu0 %v166
    %v234 = vpop.f32.mrf.mxu0
    %v235 = vadd.f32 %v163, %v234
    %v236 = vpop.f32.mrf.mxu0
    %237 = vdwg.mxu0
    %v238 = vmax.f32 %v235, 0.0
    %v239 = vld [vmem:[%s5] sm:$0xff]
    %v240 = vld [vmem:[%s5 + $0x8] sm:$0xff]
    %v241 = vld [vmem:[%s5 + $0x10] sm:$0xff]
    %v242 = vld [vmem:[%s5 + $0x18] sm:$0xff]
    %v243 = vld [vmem:[%s6] sm:$0x1]
    %v245 = vlaneseq
    %v246 = vshrl.u32 %v245, 7
    %v247 = vsub.s32 0, %v246
    %v248 = vrot.slane %v243, %v247
    %vm250 = vcmask 261120
    %v252 = vsel %vm250, %v238, 0
    %254 = vmatprep.subr.mxu0 0.0
    %255 = vmatpush1.msra.mxu0 0.0
    %256 = vmatprep.subr.mxu0 0.0
    %257 = vmatpush1.msra.mxu0 0.0
    %258 = vmatprep.subr.mxu0 0.0
    %259 = vmatpush1.msra.mxu0 0.0
    %260 = vmatprep.subr.mxu0 0.0
    %261 = vmatpush1.msra.mxu0 0.0
    %262 = vmatprep.subr.mxu0 0.0
    %263 = vmatpush1.msra.mxu0 0.0
    %264 = vmatprep.subr.mxu0 0.0
    %265 = vmatpush1.msra.mxu0 0.0
    %266 = vmatprep.subr.mxu0 0.0
    %267 = vmatpush1.msra.mxu0 0.0
    %268 = vmatprep.subr.mxu0 0.0
    %269 = vmatpush1.msra.mxu0 0.0
    %270 = vmatprep.subr.mxu0 0.0
    %271 = vmatpush1.msra.mxu0 0.0
    %272 = vmatprep.subr.mxu0 0.0
    %273 = vmatpush1.msra.mxu0 0.0
    %274 = vmatprep.subr.mxu0 0.0
    %275 = vmatpush1.msra.mxu0 0.0
    %276 = vmatprep.subr.mxu0 0.0
    %277 = vmatpush1.msra.mxu0 0.0
    %278 = vmatprep.subr.mxu0 0.0
    %279 = vmatpush1.msra.mxu0 %v242
    %280 = vmatprep.subr.mxu0 0.0
    %281 = vmatpush1.msra.mxu0 %v241
    %282 = vmatprep.subr.mxu0 0.0
    %283 = vmatpush1.msra.mxu0 %v240
    %284 = vmatprep.subr.mxu0 0.0
    %285 = vmatpush1.msra.mxu0 %v239
    %286 = vmatprep.subr.mxu0 0.0
    %287 = vmatpush2.msra.mxu0 0.0
    %288 = vmatprep.subr.mxu0 0.0
    %289 = vmatpush2.msra.mxu0 0.0
    %290 = vmatprep.subr.mxu0 0.0
    %291 = vmatpush2.msra.mxu0 0.0
    %292 = vmatprep.subr.mxu0 0.0
    %293 = vmatpush2.msra.mxu0 0.0
    %294 = vmatprep.subr.mxu0 0.0
    %295 = vmatpush2.msra.mxu0 0.0
    %296 = vmatprep.subr.mxu0 0.0
    %297 = vmatpush2.msra.mxu0 0.0
    %298 = vmatprep.subr.mxu0 0.0
    %299 = vmatpush2.msra.mxu0 0.0
    %300 = vmatprep.subr.mxu0 0.0
    %301 = vmatpush2.msra.mxu0 0.0
    %302 = vmatprep.subr.mxu0 0.0
    %303 = vmatpush2.msra.mxu0 0.0
    %304 = vmatprep.subr.mxu0 0.0
    %305 = vmatpush2.msra.mxu0 0.0
    %306 = vmatprep.subr.mxu0 0.0
    %307 = vmatpush2.msra.mxu0 0.0
    %308 = vmatprep.subr.mxu0 0.0
    %309 = vmatpush2.msra.mxu0 0.0
    %310 = vmatprep.subr.mxu0 0.0
    %311 = vmatpush2.msra.mxu0 0.0
    %312 = vmatprep.subr.mxu0 0.0
    %313 = vmatpush2.msra.mxu0 0.0
    %314 = vmatprep.subr.mxu0 0.0
    %315 = vmatpush2.msra.mxu0 0.0
    %316 = vmatprep.subr.mxu0 0.0
    %317 = vmatpush2.msra.mxu0 0.0
    %318 = vmatprep.mubr.f32.mxu0 0.0
    %319 = vmatmul.mubr.f32.gmra.mxu0 %v252
    %v320 = vpop.f32.mrf.mxu0
    %v321 = vadd.f32 %v248, %v320
    %v322 = vpop.f32.mrf.mxu0
    %323 = vdwg.mxu0
    %v324 = vmax.f32 %v321, 0.0
    %v325 = vld [vmem:[#allocation5] sm:$0xff]
    %v326 = vld [vmem:[#allocation5 + $0x8] sm:$0xff]
    %v327 = vld [vmem:[#allocation5 + $0x10] sm:$0xff]
    %v328 = vld [vmem:[#allocation5 + $0x18] sm:$0xff]
    %v329 = vld [vmem:[%s8] sm:$0x1]
    %v331 = vlaneseq
    %v332 = vshrl.u32 %v331, 7
    %v333 = vsub.s32 0, %v332
    %v334 = vrot.slane %v329, %v333
    %v337 = vsel %vm250, %v324, 0
    %339 = vmatprep.subr.mxu0 0.0
    %340 = vmatpush1.msra.mxu0 0.0
    %341 = vmatprep.subr.mxu0 0.0
    %342 = vmatpush1.msra.mxu0 0.0
    %343 = vmatprep.subr.mxu0 0.0
    %344 = vmatpush1.msra.mxu0 0.0
    %345 = vmatprep.subr.mxu0 0.0
    %346 = vmatpush1.msra.mxu0 0.0
    %347 = vmatprep.subr.mxu0 0.0
    %348 = vmatpush1.msra.mxu0 0.0
    %349 = vmatprep.subr.mxu0 0.0
    %350 = vmatpush1.msra.mxu0 0.0
    %351 = vmatprep.subr.mxu0 0.0
    %352 = vmatpush1.msra.mxu0 0.0
    %353 = vmatprep.subr.mxu0 0.0
    %354 = vmatpush1.msra.mxu0 0.0
    %355 = vmatprep.subr.mxu0 0.0
    %356 = vmatpush1.msra.mxu0 0.0
    %357 = vmatprep.subr.mxu0 0.0
    %358 = vmatpush1.msra.mxu0 0.0
    %359 = vmatprep.subr.mxu0 0.0
    %360 = vmatpush1.msra.mxu0 0.0
    %361 = vmatprep.subr.mxu0 0.0
    %362 = vmatpush1.msra.mxu0 0.0
    %363 = vmatprep.subr.mxu0 0.0
    %364 = vmatpush1.msra.mxu0 %v328
    %365 = vmatprep.subr.mxu0 0.0
    %366 = vmatpush1.msra.mxu0 %v327
    %367 = vmatprep.subr.mxu0 0.0
    %368 = vmatpush1.msra.mxu0 %v326
    %369 = vmatprep.subr.mxu0 0.0
    %370 = vmatpush1.msra.mxu0 %v325
    %371 = vmatprep.subr.mxu0 0.0
    %372 = vmatpush2.msra.mxu0 0.0
    %373 = vmatprep.subr.mxu0 0.0
    %374 = vmatpush2.msra.mxu0 0.0
    %375 = vmatprep.subr.mxu0 0.0
    %376 = vmatpush2.msra.mxu0 0.0
    %377 = vmatprep.subr.mxu0 0.0
    %378 = vmatpush2.msra.mxu0 0.0
    %379 = vmatprep.subr.mxu0 0.0
    %380 = vmatpush2.msra.mxu0 0.0
    %381 = vmatprep.subr.mxu0 0.0
    %382 = vmatpush2.msra.mxu0 0.0
    %383 = vmatprep.subr.mxu0 0.0
    %384 = vmatpush2.msra.mxu0 0.0
    %385 = vmatprep.subr.mxu0 0.0
    %386 = vmatpush2.msra.mxu0 0.0
    %387 = vmatprep.subr.mxu0 0.0
    %388 = vmatpush2.msra.mxu0 0.0
    %389 = vmatprep.subr.mxu0 0.0
    %390 = vmatpush2.msra.mxu0 0.0
    %391 = vmatprep.subr.mxu0 0.0
    %392 = vmatpush2.msra.mxu0 0.0
    %393 = vmatprep.subr.mxu0 0.0
    %394 = vmatpush2.msra.mxu0 0.0
    %395 = vmatprep.subr.mxu0 0.0
    %396 = vmatpush2.msra.mxu0 0.0
    %397 = vmatprep.subr.mxu0 0.0
    %398 = vmatpush2.msra.mxu0 0.0
    %399 = vmatprep.subr.mxu0 0.0
    %400 = vmatpush2.msra.mxu0 0.0
    %401 = vmatprep.subr.mxu0 0.0
    %402 = vmatpush2.msra.mxu0 0.0
    %403 = vmatprep.mubr.f32.mxu0 0.0
    %404 = vmatmul.mubr.f32.gmra.mxu0 %v337
    %v405 = vpop.f32.mrf.mxu0
    %v406 = vadd.f32 %v334, %v405
    %v407 = vpop.f32.mrf.mxu0
    %408 = vdwg.mxu0
    %v409 = vmax.f32 %v406, 0.0
    %vm410 = vcmask 254976
    %411 = vst.msk [vmem:[#allocation7] sm:$0x3] %vm410, %v409
    // Predicated region
    $region46: #{tpu_custom_call.1} parent=1 // pred_check
      _
    $region47: #{tpu_custom_call.1} parent=1 // pred_check_branch
      %413 = sbr.rel (0) target = $region49
    $region48: #{tpu_custom_call.1} parent=1 // pred_region
      %s415 = ssub.s32 32, 32
      %416 = vsyncadd [#allocation4], %s415
      %s418 = sshll.u32 [#allocation7], 4
      %s419 = int_to_ptr.vmem [resolvable:$true] %s418
      %421 = dma.vmem_to_hbm [thread:$0]  %s419, 32, %s9, [#allocation4]
    $region49: #{tpu_custom_call.1} parent=1 // pred_fallthru
      _
    // Predicated region
    $region50: #{tpu_custom_call.1} parent=1 // pred_check
      _
    $region51: #{tpu_custom_call.1} parent=1 // pred_check_branch
      %423 = sbr.rel (0) target = $region53
    $region52: #{tpu_custom_call.1} parent=1 // pred_region
      %424 = dma.done [#allocation4], 32
    $region53: #{tpu_custom_call.1} parent=1 // pred_fallthru
      _
    %425 = vsyncpa [#allocation3], 1
    %426 = vsyncpa [#allocation6], 1
    %427 = vsyncpa [#allocation4], 1

</llo_original>
